<compile_context>
chip_gen: v7x
topology: tpu7x:2x2x1
jax: 0.10.0
libtpu: 0.0.40
codegen_flags: <defaults>
</compile_context>

<pallas_src>
import functools

import jax
import jax.numpy as jnp
from jax.experimental import pallas as pl
from jax.experimental.pallas import tpu as pltpu


def _round_up(x, m):
    return ((x + m - 1) // m) * m


def _cdiv(a, b):
    return -(-a // b)


def _contrastive_loss_kernel(z1_ref, z2c_ref, z2d_ref, out_ref,
                             m_sc, l_sc, tgt_sc, *, inv_t, batch, tn):
    j = pl.program_id(1)

    # pos block (TM, TN): (z1 row tile) @ (z2 column tile).T -- NT contraction
    # straight to the MXU, f32 accumulation; scale by 1/T in f32 afterwards.
    pos = jax.lax.dot_general(
        z1_ref[...], z2c_ref[...], (((1,), (1,)), ((), ())),
        preferred_element_type=jnp.float32)
    pos = pos * inv_t

    # Mask padded z2 columns (global column index = j*TN + local lane).
    # Padded z2 rows are zero-filled by the wrapper, but masking keeps this
    # robust regardless of pad contents.
    col = jax.lax.broadcasted_iota(jnp.int32, pos.shape, 1) + j * tn
    pos = jnp.where(col < batch, pos, jnp.float32(-1e30))

    blk_max = jnp.max(pos, axis=1, keepdims=True)                 # (TM, 1)

    @pl.when(j == 0)
    def _():
        # s_i = <z1_i, z2_i> / T : value of every off-diagonal `neg` logit.
        s = jnp.sum(z1_ref[...].astype(jnp.float32)
                    * z2d_ref[...].astype(jnp.float32),
                    axis=1, keepdims=True) * inv_t                # (TM, 1)
        m = jnp.maximum(blk_max, s)
        l_sc[...] = (jnp.sum(jnp.exp(pos - m), axis=1, keepdims=True)
                     + (batch - 1) * jnp.exp(s - m)               # off-diag neg
                     + jnp.exp(s - 1e12 * inv_t - m))             # diag neg (B==1 case)
        m_sc[...] = m
        tgt_sc[...] = pos[:, 0:1]     # target class 0 logit = pos[i, 0] / T

    @pl.when(j > 0)
    def _():
        # Online logsumexp update with the new pos column block.
        m_prev = m_sc[...]
        m = jnp.maximum(m_prev, blk_max)
        l_sc[...] = (l_sc[...] * jnp.exp(m_prev - m)
                     + jnp.sum(jnp.exp(pos - m), axis=1, keepdims=True))
        m_sc[...] = m

    @pl.when(j == pl.num_programs(1) - 1)
    def _():
        lse = m_sc[...] + jnp.log(l_sc[...])
        out_ref[...] = (lse - tgt_sc[...]).astype(out_ref.dtype)


def contrastive_loss(z1, z2, temperature=0.05, *, block_rows=None, block_cols=1024):
    assert z1.shape == z2.shape and z1.ndim == 2
    B, D = z1.shape

    # Generation-aware VMEM budget (64 MiB/TC on v7x, 128 MiB on v5e/v6e).
    try:
        vmem_cap = int(pltpu.get_tpu_info().vmem_capacity_bytes)
    except Exception:
        vmem_cap = 128 * 1024 * 1024
    big_vmem = vmem_cap > (80 * 1024 * 1024)
    vmem_frac = 0.85 if big_vmem else 0.75

    if block_rows is None:
        block_rows = 512 if big_vmem else 256
    block_rows = max(8, _round_up(int(block_rows), 8))
    block_cols = max(8, _round_up(int(block_cols), 8))

    # Balanced row tiling on an 8-aligned batch; >= 2 row tiles (when possible)
    # so dimension_semantics=("parallel", ...) can use both v7x TensorCores.
    b8 = _round_up(B, 8)
    num_row = _cdiv(b8, block_rows)
    if b8 >= 16:
        num_row = max(num_row, 2)
    tm = _round_up(_cdiv(b8, num_row), 8)
    r_pad = tm * num_row

    # Balanced column tiling of the pos logits; z2 streams in (TN, D) blocks.
    num_col = max(_cdiv(r_pad, block_cols), 1)
    tn = _round_up(_cdiv(r_pad, num_col), 8)
    c_pad = tn * num_col

    # Minimal zero-padding (rows only; a no-op for typical power-of-2 batches).
    z1p = jnp.pad(z1, ((0, r_pad - B), (0, 0))) if r_pad != B else z1
    z2p = jnp.pad(z2, ((0, c_pad - B), (0, 0))) if c_pad != B else z2

    kernel = functools.partial(
        _contrastive_loss_kernel,
        inv_t=1.0 / float(temperature), batch=B, tn=tn)

    isz = jnp.dtype(z1.dtype).itemsize
    vmem_est = (2 * tm * D * isz        # z1 row tile (double buffered)
                + 2 * tn * D * isz      # z2 column tile (double buffered)
                + 2 * tm * D * isz      # z2 matching-row tile for s
                + 2 * tm * 4            # output tile
                + 3 * tm * 4            # m / sumexp / target scratch
                + 6 * tm * tn * 4)      # pos + softmax f32 temporaries
    vmem_limit = int(min(max(2 * vmem_est, 32 * 1024 * 1024),
                         vmem_frac * vmem_cap))

    per_row = pl.pallas_call(
        kernel,
        out_shape=jax.ShapeDtypeStruct((r_pad, 1), jnp.float32),
        grid=(num_row, num_col),
        in_specs=[
            pl.BlockSpec((tm, D), lambda i, j: (i, 0)),   # z1 row tile
            pl.BlockSpec((tn, D), lambda i, j: (j, 0)),   # z2 column tile (pos)
            pl.BlockSpec((tm, D), lambda i, j: (i, 0)),   # z2 matching rows (s)
        ],
        out_specs=pl.BlockSpec((tm, 1), lambda i, j: (i, 0)),
        scratch_shapes=[pltpu.VMEM((tm, 1), jnp.float32),   # running max
                        pltpu.VMEM((tm, 1), jnp.float32),   # running sumexp
                        pltpu.VMEM((tm, 1), jnp.float32)],  # target logit
        compiler_params=pltpu.CompilerParams(
            dimension_semantics=("parallel", "arbitrary"),
            vmem_limit_bytes=vmem_limit),
    )(z1p, z2p, z2p)

    # reduction='mean' over the real (unpadded) rows.
    return jnp.mean(per_row[:B, 0])


def _reference_loss(z1, z2, temperature=0.05):
    # Pure-JAX reference mirroring the PyTorch code exactly.
    z1 = z1.astype(jnp.float32)
    z2 = z2.astype(jnp.float32)
    pos = z1 @ z2.T
    neg = jnp.sum(z1 * z2, axis=1, keepdims=True)
    mask = jnp.eye(neg.shape[0], dtype=jnp.float32) * 1.0e12
    neg = neg - mask
    logits = jnp.concatenate([pos, neg], axis=1) / temperature
    lse = jax.scipy.special.logsumexp(logits, axis=1)
    return jnp.mean(lse - logits[:, 0])


if __name__ == "__main__":
    key = jax.random.PRNGKey(0)
    k1, k2, k3, k4 = jax.random.split(key, 4)

    # Shapes consistent with the module: a batch of embedding vectors.
    B, D = 8, 32
    z1 = jax.random.normal(k1, (B, D), dtype=jnp.float32)
    z2 = jax.random.normal(k2, (B, D), dtype=jnp.float32)

    loss = contrastive_loss(z1, z2, temperature=0.05)
    jax.block_until_ready(loss)
    ref = _reference_loss(z1, z2, temperature=0.05)
    assert jnp.allclose(loss, ref, rtol=1e-4, atol=1e-4), (loss, ref)

    # Unaligned batch: exercises row padding, padded-column mask, 2 row tiles.
    B2, D2 = 20, 32
    w1 = jax.random.normal(k3, (B2, D2), dtype=jnp.float32)
    w2 = jax.random.normal(k4, (B2, D2), dtype=jnp.float32)
    loss2 = contrastive_loss(w1, w2, temperature=0.05)
    jax.block_until_ready(loss2)
    ref2 = _reference_loss(w1, w2, temperature=0.05)
    assert jnp.allclose(loss2, ref2, rtol=1e-4, atol=1e-4), (loss2, ref2)

    # Force multiple column tiles to exercise the online-logsumexp carry path
    # (grid (3, 3) at these tiny block sizes).
    loss3 = contrastive_loss(w1, w2, temperature=0.05, block_rows=8, block_cols=8)
    jax.block_until_ready(loss3)
    assert jnp.allclose(loss3, ref2, rtol=1e-4, atol=1e-4), (loss3, ref2)

    print("KERNEL_OK")
</pallas_src>

<mosaic_0001>
module attributes {stable_mosaic.version = 11 : i64} {
  func.func @_contrastive_loss_kernel(%arg0: i32, %arg1: i32, %arg2: memref<8x32xf32, #tpu.memory_space<vmem>>, %arg3: memref<8x32xf32, #tpu.memory_space<vmem>>, %arg4: memref<8x32xf32, #tpu.memory_space<vmem>>, %arg5: memref<8x1xf32, #tpu.memory_space<vmem>>, %arg6: memref<8x1xf32, #tpu.memory_space<vmem>>, %arg7: memref<8x1xf32, #tpu.memory_space<vmem>>, %arg8: memref<8x1xf32, #tpu.memory_space<vmem>>) attributes {dimension_semantics = [#tpu.dimension_semantics<parallel>, #tpu.dimension_semantics<arbitrary>], iteration_bounds = array<i64: 1, 1>, scalar_prefetch = 0 : i64, scratch_operands = 3 : i64, tpu.core_type = #tpu.core_type<tc>, window_params = [{transform_indices = @transform_0, window_bounds = array<i64: 8, 32>}, {transform_indices = @transform_1, window_bounds = array<i64: 8, 32>}, {transform_indices = @transform_2, window_bounds = array<i64: 8, 32>}, {transform_indices = @transform_3, window_bounds = array<i64: 8, 1>}]} {
    %c0 = arith.constant 0 : index
    %c0_0 = arith.constant 0 : index
    %0 = vector.load %arg2[%c0, %c0_0] : memref<8x32xf32, #tpu.memory_space<vmem>>, vector<8x32xf32>
    %c0_1 = arith.constant 0 : index
    %c0_2 = arith.constant 0 : index
    %1 = vector.load %arg3[%c0_1, %c0_2] : memref<8x32xf32, #tpu.memory_space<vmem>>, vector<8x32xf32>
    %cst = arith.constant dense<0.000000e+00> : vector<8x8xf32>
    %2 = tpu.matmul %0, %1, %cst {dimension_numbers = #tpu.dot_dimension_numbers<[1], [1], [0], [0], [0, 0, 1, 0], [], []>} : vector<8x32xf32>, vector<8x32xf32>, vector<8x8xf32> -> vector<8x8xf32>
    %cst_3 = arith.constant 2.000000e+01 : f32
    %3 = vector.broadcast %cst_3 : f32 to vector<8x8xf32>
    %4 = arith.mulf %2, %3 : vector<8x8xf32>
    %5 = tpu.iota {dimensions = array<i32: 1>} : vector<8x8xi32>
    %c8_i32 = arith.constant 8 : i32
    %6 = arith.muli %arg1, %c8_i32 : i32
    %7 = vector.broadcast %6 : i32 to vector<8x8xi32>
    %8 = arith.addi %5, %7 : vector<8x8xi32>
    %c8_i32_4 = arith.constant 8 : i32
    %9 = vector.broadcast %c8_i32_4 : i32 to vector<8x8xi32>
    %10 = arith.cmpi slt, %8, %9 : vector<8x8xi32>
    %cst_5 = arith.constant -1.000000e+30 : f32
    %11 = vector.broadcast %cst_5 : f32 to vector<8x8xf32>
    %12 = arith.select %10, %4, %11 : vector<8x8xi1>, vector<8x8xf32>
    %cst_6 = arith.constant dense<0xFF800000> : vector<8xf32>
    %13 = vector.multi_reduction <maximumf>, %12, %cst_6 [1] : vector<8x8xf32> to vector<8xf32>
    %14 = vector.shape_cast %13 : vector<8xf32> to vector<8x1xf32>
    %c0_i32 = arith.constant 0 : i32
    %15 = arith.cmpi eq, %arg1, %c0_i32 : i32
    %16 = arith.extui %15 : i1 to i32
    %c0_i32_7 = arith.constant 0 : i32
    %17 = arith.cmpi ne, %16, %c0_i32_7 : i32
    scf.if %17 {
      %c0_12 = arith.constant 0 : index
      %c0_13 = arith.constant 0 : index
      %24 = vector.load %arg2[%c0_12, %c0_13] : memref<8x32xf32, #tpu.memory_space<vmem>>, vector<8x32xf32>
      %c0_14 = arith.constant 0 : index
      %c0_15 = arith.constant 0 : index
      %25 = vector.load %arg4[%c0_14, %c0_15] : memref<8x32xf32, #tpu.memory_space<vmem>>, vector<8x32xf32>
      %26 = arith.mulf %24, %25 : vector<8x32xf32>
      %cst_16 = arith.constant dense<0.000000e+00> : vector<8xf32>
      %27 = vector.multi_reduction <add>, %26, %cst_16 [1] : vector<8x32xf32> to vector<8xf32>
      %28 = vector.shape_cast %27 : vector<8xf32> to vector<8x1xf32>
      %cst_17 = arith.constant 2.000000e+01 : f32
      %29 = vector.broadcast %cst_17 : f32 to vector<8x1xf32>
      %30 = arith.mulf %28, %29 : vector<8x1xf32>
      %31 = arith.maximumf %14, %30 : vector<8x1xf32>
      %32 = vector.broadcast %31 : vector<8x1xf32> to vector<8x8xf32>
      %33 = arith.subf %12, %32 : vector<8x8xf32>
      %34 = math.exp %33 : vector<8x8xf32>
      %cst_18 = arith.constant dense<0.000000e+00> : vector<8xf32>
      %35 = vector.multi_reduction <add>, %34, %cst_18 [1] : vector<8x8xf32> to vector<8xf32>
      %36 = vector.shape_cast %35 : vector<8xf32> to vector<8x1xf32>
      %37 = arith.subf %30, %31 : vector<8x1xf32>
      %38 = math.exp %37 : vector<8x1xf32>
      %cst_19 = arith.constant 7.000000e+00 : f32
      %39 = vector.broadcast %cst_19 : f32 to vector<8x1xf32>
      %40 = arith.mulf %39, %38 : vector<8x1xf32>
      %41 = arith.addf %36, %40 : vector<8x1xf32>
      %cst_20 = arith.constant 2.000000e+13 : f32
      %42 = vector.broadcast %cst_20 : f32 to vector<8x1xf32>
      %43 = arith.subf %30, %42 : vector<8x1xf32>
      %44 = arith.subf %43, %31 : vector<8x1xf32>
      %45 = math.exp %44 : vector<8x1xf32>
      %46 = arith.addf %41, %45 : vector<8x1xf32>
      %c0_21 = arith.constant 0 : index
      %c0_22 = arith.constant 0 : index
      %47 = vector.load %arg7[%c0_21, %c0_22] : memref<8x1xf32, #tpu.memory_space<vmem>>, vector<8x1xf32>
      tpu.vector_store %arg7[%c0_21, %c0_22], %46 {strides = array<i32>} : memref<8x1xf32, #tpu.memory_space<vmem>>, vector<8x1xf32>,
      %c0_23 = arith.constant 0 : index
      %c0_24 = arith.constant 0 : index
      %48 = vector.load %arg6[%c0_23, %c0_24] : memref<8x1xf32, #tpu.memory_space<vmem>>, vector<8x1xf32>
      tpu.vector_store %arg6[%c0_23, %c0_24], %31 {strides = array<i32>} : memref<8x1xf32, #tpu.memory_space<vmem>>, vector<8x1xf32>,
      %49 = vector.extract_strided_slice %12 {offsets = [0, 0], sizes = [8, 1], strides = [1, 1]} : vector<8x8xf32> to vector<8x1xf32>
      %c0_25 = arith.constant 0 : index
      %c0_26 = arith.constant 0 : index
      %50 = vector.load %arg8[%c0_25, %c0_26] : memref<8x1xf32, #tpu.memory_space<vmem>>, vector<8x1xf32>
      tpu.vector_store %arg8[%c0_25, %c0_26], %49 {strides = array<i32>} : memref<8x1xf32, #tpu.memory_space<vmem>>, vector<8x1xf32>,
    } else {
    }
    %c0_i32_8 = arith.constant 0 : i32
    %18 = arith.cmpi sgt, %arg1, %c0_i32_8 : i32
    %19 = arith.extui %18 : i1 to i32
    %c0_i32_9 = arith.constant 0 : i32
    %20 = arith.cmpi ne, %19, %c0_i32_9 : i32
    scf.if %20 {
      %c0_12 = arith.constant 0 : index
      %c0_13 = arith.constant 0 : index
      %24 = vector.load %arg6[%c0_12, %c0_13] : memref<8x1xf32, #tpu.memory_space<vmem>>, vector<8x1xf32>
      %25 = arith.maximumf %24, %14 : vector<8x1xf32>
      %c0_14 = arith.constant 0 : index
      %c0_15 = arith.constant 0 : index
      %26 = vector.load %arg7[%c0_14, %c0_15] : memref<8x1xf32, #tpu.memory_space<vmem>>, vector<8x1xf32>
      %27 = arith.subf %24, %25 : vector<8x1xf32>
      %28 = math.exp %27 : vector<8x1xf32>
      %29 = arith.mulf %26, %28 : vector<8x1xf32>
      %30 = vector.broadcast %25 : vector<8x1xf32> to vector<8x8xf32>
      %31 = arith.subf %12, %30 : vector<8x8xf32>
      %32 = math.exp %31 : vector<8x8xf32>
      %cst_16 = arith.constant dense<0.000000e+00> : vector<8xf32>
      %33 = vector.multi_reduction <add>, %32, %cst_16 [1] : vector<8x8xf32> to vector<8xf32>
      %34 = vector.shape_cast %33 : vector<8xf32> to vector<8x1xf32>
      %35 = arith.addf %29, %34 : vector<8x1xf32>
      %c0_17 = arith.constant 0 : index
      %c0_18 = arith.constant 0 : index
      %36 = vector.load %arg7[%c0_17, %c0_18] : memref<8x1xf32, #tpu.memory_space<vmem>>, vector<8x1xf32>
      tpu.vector_store %arg7[%c0_17, %c0_18], %35 {strides = array<i32>} : memref<8x1xf32, #tpu.memory_space<vmem>>, vector<8x1xf32>,
      %c0_19 = arith.constant 0 : index
      %c0_20 = arith.constant 0 : index
      %37 = vector.load %arg6[%c0_19, %c0_20] : memref<8x1xf32, #tpu.memory_space<vmem>>, vector<8x1xf32>
      tpu.vector_store %arg6[%c0_19, %c0_20], %25 {strides = array<i32>} : memref<8x1xf32, #tpu.memory_space<vmem>>, vector<8x1xf32>,
    } else {
    }
    %c0_i32_10 = arith.constant 0 : i32
    %21 = arith.cmpi eq, %arg1, %c0_i32_10 : i32
    %22 = arith.extui %21 : i1 to i32
    %c0_i32_11 = arith.constant 0 : i32
    %23 = arith.cmpi ne, %22, %c0_i32_11 : i32
    scf.if %23 {
      %c0_12 = arith.constant 0 : index
      %c0_13 = arith.constant 0 : index
      %24 = vector.load %arg6[%c0_12, %c0_13] : memref<8x1xf32, #tpu.memory_space<vmem>>, vector<8x1xf32>
      %c0_14 = arith.constant 0 : index
      %c0_15 = arith.constant 0 : index
      %25 = vector.load %arg7[%c0_14, %c0_15] : memref<8x1xf32, #tpu.memory_space<vmem>>, vector<8x1xf32>
      %26 = math.log %25 : vector<8x1xf32>
      %27 = arith.addf %24, %26 : vector<8x1xf32>
      %c0_16 = arith.constant 0 : index
      %c0_17 = arith.constant 0 : index
      %28 = vector.load %arg8[%c0_16, %c0_17] : memref<8x1xf32, #tpu.memory_space<vmem>>, vector<8x1xf32>
      %29 = arith.subf %27, %28 : vector<8x1xf32>
      %c0_18 = arith.constant 0 : index
      %c0_19 = arith.constant 0 : index
      %30 = vector.load %arg5[%c0_18, %c0_19] : memref<8x1xf32, #tpu.memory_space<vmem>>, vector<8x1xf32>
      tpu.vector_store %arg5[%c0_18, %c0_19], %29 {strides = array<i32>} : memref<8x1xf32, #tpu.memory_space<vmem>>, vector<8x1xf32>,
    } else {
    }
    return
  }
  func.func @transform_0(%arg0: i32, %arg1: i32) -> (i32, i32) {
    %c0_i32 = arith.constant 0 : i32
    %c0_i32_0 = arith.constant 0 : i32
    return %arg0, %c0_i32 : i32, i32
  }
  func.func @transform_1(%arg0: i32, %arg1: i32) -> (i32, i32) {
    %c0_i32 = arith.constant 0 : i32
    %c0_i32_0 = arith.constant 0 : i32
    return %arg1, %c0_i32 : i32, i32
  }
  func.func @transform_2(%arg0: i32, %arg1: i32) -> (i32, i32) {
    %c0_i32 = arith.constant 0 : i32
    %c0_i32_0 = arith.constant 0 : i32
    return %arg0, %c0_i32 : i32, i32
  }
  func.func @transform_3(%arg0: i32, %arg1: i32) -> (i32, i32) {
    %c0_i32 = arith.constant 0 : i32
    %c0_i32_0 = arith.constant 0 : i32
    return %arg0, %c0_i32 : i32, i32
  }
}

</mosaic_0001>

<llo_original>
// kernel: tpu_custom_call.1
$region0: #{tpu_custom_call.1}
  #allocation0 [shape = 'u32[]', space=smem, size = 0x4, offset = 0x4, fixed_abs, tag = 'smem constant byte address 0x4 - core index']
  #allocation1 [shape = 'u32[144,128]{1,0:T(1,128)}', space=vmem, size = 0x12000, scoped, tag = 'internal scratch']
  #allocation2 [shape = 'f32[8,1]{1,0:T(8,128)}', space=vmem, size = 0x1000, scoped, tag = 'scratch operand']
  #allocation3 [shape = 'f32[8,1]{1,0:T(8,128)}', space=vmem, size = 0x1000, scoped, tag = 'scratch operand']
  #allocation4 [shape = 'f32[8,1]{1,0:T(8,128)}', space=vmem, size = 0x1000, scoped, tag = 'scratch operand']
  %s0 = inlined_call_operand.hbm [shape: f32[8,32], index: 0, kind: input, shape index: {}]
  %s1 = inlined_call_operand.hbm [shape: f32[8,32], index: 1, kind: input, shape index: {}]
  %s2 = inlined_call_operand.hbm [shape: f32[8,32], index: 2, kind: input, shape index: {}]
  %s3 = inlined_call_operand.vmem [shape: f32[8,1], index: 3, kind: output, shape index: {}]
  %s4 = sld [smem:[#allocation0]]
  $region46: #{tpu_custom_call.1} parent=0
    _
  %s6 = ssub.s32 1, %s4
  %s7 = scalar_select 0, %s6, %s4
  $region1: #{tpu_custom_call.1} parent=0
    #allocation5 [shape = 'u8[4096]{0}', space=vmem, size = 0x1000, scoped, tag = 'input window, operand 0, single buffered']
    #allocation6 [shape = 's32[1]{0}', space=sflag, size = 0x4, scoped, tag = 'scoped memory for tpu_custom_call.1']
    #allocation7 [shape = 'u8[4096]{0}', space=vmem, size = 0x1000, scoped, tag = 'input window, operand 1, single buffered']
    #allocation8 [shape = 's32[1]{0}', space=sflag, size = 0x4, scoped, tag = 'scoped memory for tpu_custom_call.1']
    #allocation9 [shape = 'u8[4096]{0}', space=vmem, size = 0x1000, scoped, tag = 'input window, operand 2, single buffered']
    %8 = vsyncpa [#allocation6], 0
    %9 = vsyncpa [#allocation8], 0
    // Predicated region
    $region2: #{tpu_custom_call.1} parent=1 // pred_check
      _
    $region3: #{tpu_custom_call.1} parent=1 // pred_check_branch
      %11 = sbr.rel (0) target = $region5
    $region4: #{tpu_custom_call.1} parent=1 // pred_region
      %s13 = ssub.s32 128, 128
      %14 = vsyncadd [#allocation6], %s13
      %s16 = sshll.u32 [#allocation5], 4
      %s17 = int_to_ptr.vmem [resolvable:$true] %s16
      %19 = dma.hbm_to_vmem [thread:$0]  %s0, 128, %s17, [#allocation6]
    $region5: #{tpu_custom_call.1} parent=1 // pred_fallthru
      _
    // Predicated region
    $region6: #{tpu_custom_call.1} parent=1 // pred_check
      _
    $region7: #{tpu_custom_call.1} parent=1 // pred_check_branch
      %21 = sbr.rel (0) target = $region9
    $region8: #{tpu_custom_call.1} parent=1 // pred_region
      %s23 = ssub.s32 128, 128
      %24 = vsyncadd [#allocation8], %s23
      %s26 = sshll.u32 [#allocation7], 4
      %s27 = int_to_ptr.vmem [resolvable:$true] %s26
      %29 = dma.hbm_to_vmem [thread:$0]  %s1, 128, %s27, [#allocation8]
    $region9: #{tpu_custom_call.1} parent=1 // pred_fallthru
      _
    // Predicated region
    $region10: #{tpu_custom_call.1} parent=1 // pred_check
      _
    $region11: #{tpu_custom_call.1} parent=1 // pred_check_branch
      %31 = sbr.rel (0) target = $region13
    $region12: #{tpu_custom_call.1} parent=1 // pred_region
      %s33 = ssub.s32 128, 128
      %34 = vsyncadd [#allocation8], %s33
      %s36 = sshll.u32 [#allocation9], 4
      %s37 = int_to_ptr.vmem [resolvable:$true] %s36
      %39 = dma.hbm_to_vmem [thread:$0]  %s2, 128, %s37, [#allocation8]
    $region13: #{tpu_custom_call.1} parent=1 // pred_fallthru
      _
    // Predicated region
    $region14: #{tpu_custom_call.1} parent=1 // pred_check
      _
    $region15: #{tpu_custom_call.1} parent=1 // pred_check_branch
      %41 = sbr.rel (0) target = $region17
    $region16: #{tpu_custom_call.1} parent=1 // pred_region
      %42 = dma.done [#allocation6], 128
    $region17: #{tpu_custom_call.1} parent=1 // pred_fallthru
      _
    // Predicated region
    $region18: #{tpu_custom_call.1} parent=1 // pred_check
      _
    $region19: #{tpu_custom_call.1} parent=1 // pred_check_branch
      %44 = sbr.rel (0) target = $region21
    $region20: #{tpu_custom_call.1} parent=1 // pred_region
      %45 = dma.done [#allocation8], 128
    $region21: #{tpu_custom_call.1} parent=1 // pred_fallthru
      _
    // Predicated region
    $region22: #{tpu_custom_call.1} parent=1 // pred_check
      _
    $region23: #{tpu_custom_call.1} parent=1 // pred_check_branch
      %47 = sbr.rel (0) target = $region25
    $region24: #{tpu_custom_call.1} parent=1 // pred_region
      %48 = dma.done [#allocation8], 128
    $region25: #{tpu_custom_call.1} parent=1 // pred_fallthru
      _
    %v49 = vld [vmem:[#allocation5] sm:$0xff]
    %v50 = vld [vmem:[#allocation7] sm:$0xff]
    %vm51 = vcmask 261120
    %v53 = vsel %vm51, %v49, 0
    %v56 = vsel %vm51, %v50, 0
    %58 = vmatprep.subr.mxu0 0.0
    %59 = vmatpush1.xpose.msra.mxu0 %v56
    %60 = vmatprep.subr.mxu0 0.0
    %61 = vmatpush1.xpose.msra.mxu0 0.0
    %62 = vmatprep.subr.mxu0 0.0
    %63 = vmatpush1.xpose.msra.mxu0 0.0
    %64 = vmatprep.subr.mxu0 0.0
    %65 = vmatpush1.xpose.msra.mxu0 0.0
    %66 = vmatprep.subr.mxu0 0.0
    %67 = vmatpush1.xpose.msra.mxu0 0.0
    %68 = vmatprep.subr.mxu0 0.0
    %69 = vmatpush1.xpose.msra.mxu0 0.0
    %70 = vmatprep.subr.mxu0 0.0
    %71 = vmatpush1.xpose.msra.mxu0 0.0
    %72 = vmatprep.subr.mxu0 0.0
    %73 = vmatpush1.xpose.msra.mxu0 0.0
    %74 = vmatprep.subr.mxu0 0.0
    %75 = vmatpush1.xpose.msra.mxu0 0.0
    %76 = vmatprep.subr.mxu0 0.0
    %77 = vmatpush1.xpose.msra.mxu0 0.0
    %78 = vmatprep.subr.mxu0 0.0
    %79 = vmatpush1.xpose.msra.mxu0 0.0
    %80 = vmatprep.subr.mxu0 0.0
    %81 = vmatpush1.xpose.msra.mxu0 0.0
    %82 = vmatprep.subr.mxu0 0.0
    %83 = vmatpush1.xpose.msra.mxu0 0.0
    %84 = vmatprep.subr.mxu0 0.0
    %85 = vmatpush1.xpose.msra.mxu0 0.0
    %86 = vmatprep.subr.mxu0 0.0
    %87 = vmatpush1.xpose.msra.mxu0 0.0
    %88 = vmatprep.subr.mxu0 0.0
    %89 = vmatpush1.xpose.msra.mxu0 0.0
    %90 = vmatprep.subr.mxu0 0.0
    %91 = vmatpush1.xpose.msra.mxu0 0.0
    %92 = vmatprep.subr.mxu0 0.0
    %93 = vmatpush1.xpose.msra.mxu0 0.0
    %94 = vmatprep.subr.mxu0 0.0
    %95 = vmatpush1.xpose.msra.mxu0 0.0
    %96 = vmatprep.subr.mxu0 0.0
    %97 = vmatpush1.xpose.msra.mxu0 0.0
    %98 = vmatprep.subr.mxu0 0.0
    %99 = vmatpush1.xpose.msra.mxu0 0.0
    %100 = vmatprep.subr.mxu0 0.0
    %101 = vmatpush1.xpose.msra.mxu0 0.0
    %102 = vmatprep.subr.mxu0 0.0
    %103 = vmatpush1.xpose.msra.mxu0 0.0
    %104 = vmatprep.subr.mxu0 0.0
    %105 = vmatpush1.xpose.msra.mxu0 0.0
    %106 = vmatprep.subr.mxu0 0.0
    %107 = vmatpush1.xpose.msra.mxu0 0.0
    %108 = vmatprep.subr.mxu0 0.0
    %109 = vmatpush1.xpose.msra.mxu0 0.0
    %110 = vmatprep.subr.mxu0 0.0
    %111 = vmatpush1.xpose.msra.mxu0 0.0
    %112 = vmatprep.subr.mxu0 0.0
    %113 = vmatpush1.xpose.msra.mxu0 0.0
    %114 = vmatprep.subr.mxu0 0.0
    %115 = vmatpush1.xpose.msra.mxu0 0.0
    %116 = vmatprep.subr.mxu0 0.0
    %117 = vmatpush1.xpose.msra.mxu0 0.0
    %118 = vmatprep.subr.mxu0 0.0
    %119 = vmatpush1.xpose.msra.mxu0 0.0
    %120 = vmatprep.subr.mxu0 0.0
    %121 = vmatpush1.xpose.msra.mxu0 0.0
    %122 = vmatprep.mubr.f32.mxu0 0.0
    %123 = vmatmul.mubr.f32.gmra.mrb[0].mxu0 %v53
    %v124 = vpop.f32.mrb[0].mxu0
    %v125 = vadd.f32 0.0, %v124
    %v126 = vpop.f32.mrb[0].mxu0
    %127 = vdwg.mxu0
    %v128 = vmul.f32 %v125, 20.0
    %v129 = vlaneseq
    %v130 = vand.u32 %v129, 127
    %s131 = smul.u32 0, 8
    %v132 = vstv %s131
    %v133 = vadd.s32 %v130, %v132
    %vm134 = vcmp.lt.s32.totalorder %v133, 8
    %v135 = vsel %vm134, %v128, -1e+30
    %vm136 = vcmask 64512
    %v137 = vsel %vm136, %v135, -inf
    %138 = vmax.xlane.f32.xlu0 %v137
    %v139 = vpop.xlane.xlu0 %138
    %p140 = scmp.eq.s32.totalorder 0, 0
    // Predicated region
    $region26: #{tpu_custom_call.1} parent=1 // pred_check
      %p141 = pneg %p140
    $region27: #{tpu_custom_call.1} parent=1 // pred_check_branch
      %143 = sbr.rel (%p141) target = $region29
    $region28: #{tpu_custom_call.1} parent=1 // pred_region
      %v144 = vld [vmem:[#allocation5] sm:$0xff]
      %v145 = vld [vmem:[#allocation9] sm:$0xff]
      %v146 = vmul.f32 %v144, %v145
      %v147 = vsel %vm51, %v146, 0.0
      %148 = vadd.xlane.f32.xlu0 %v147
      %v149 = vpop.xlane.xlu0 %148
      %v150 = vmul.f32 %v149, 20.0
      %v151 = vmax.f32 %v139, %v150
      %v152 = vsub.f32 %v135, %v151
      %v153 = vmul.f32 %v152, 1.442695
      %v154 = vpow.pop %v153
      %v155 = vsel %vm136, %v154, 0.0
      %156 = vadd.xlane.f32.xlu0 %v155
      %v157 = vpop.xlane.xlu0 %156
      %v158 = vsub.f32 %v150, %v151
      %v159 = vmul.f32 %v158, 1.442695
      %v160 = vpow.pop %v159
      %v161 = vmul.f32 %v160, 7.0
      %v162 = vadd.f32 %v157, %v161
      %v163 = vsub.f32 %v150, 2e+13
      %v164 = vsub.f32 %v163, %v151
      %v165 = vmul.f32 %v164, 1.442695
      %v166 = vpow.pop %v165
      %v167 = vadd.f32 %v162, %v166
      %vm168 = vcmask 7168
      %169 = vst.msk [vmem:[#allocation3] sm:$0xff] %vm168, %v167
      %170 = vst.msk [vmem:[#allocation2] sm:$0xff] %vm168, %v151
      %171 = vst.msk [vmem:[#allocation4] sm:$0xff] %vm168, %v135
    $region29: #{tpu_custom_call.1} parent=1 // pred_fallthru
      _
    %p172 = scmp.gt.s32.totalorder 0, 0
    // Predicated region
    $region30: #{tpu_custom_call.1} parent=1 // pred_check
      %p173 = pneg %p172
    $region31: #{tpu_custom_call.1} parent=1 // pred_check_branch
      %175 = sbr.rel (%p173) target = $region33
    $region32: #{tpu_custom_call.1} parent=1 // pred_region
      %v176 = vld [vmem:[#allocation2] sm:$0xff]
      %v177 = vmax.f32 %v176, %v139
      %v178 = vld [vmem:[#allocation3] sm:$0xff]
      %v179 = vsub.f32 %v176, %v177
      %v180 = vmul.f32 %v179, 1.442695
      %v181 = vpow.pop %v180
      %v182 = vmul.f32 %v178, %v181
      %184 = vset.pattern.permute.xlu0 0
      %185 = vperm.xlu0 %184, %v177
      %v186 = vpop.permute.xlu0 %185
      %v188 = vsub.f32 %v135, %v186
      %v189 = vmul.f32 %v188, 1.442695
      %v190 = vpow.pop %v189
      %v191 = vsel %vm136, %v190, 0.0
      %192 = vadd.xlane.f32.xlu0 %v191
      %v193 = vpop.xlane.xlu0 %192
      %v194 = vadd.f32 %v182, %v193
      %vm195 = vcmask 7168
      %196 = vst.msk [vmem:[#allocation3] sm:$0xff] %vm195, %v194
      %197 = vst.msk [vmem:[#allocation2] sm:$0xff] %vm195, %v177
    $region33: #{tpu_custom_call.1} parent=1 // pred_fallthru
      _
    // Predicated region
    $region34: #{tpu_custom_call.1} parent=1 // pred_check
      %p198 = pneg %p140
    $region35: #{tpu_custom_call.1} parent=1 // pred_check_branch
      %200 = sbr.rel (%p198) target = $region37
    $region36: #{tpu_custom_call.1} parent=1 // pred_region
      %v201 = vld [vmem:[#allocation2] sm:$0xff]
      %v202 = vld [vmem:[#allocation3] sm:$0xff]
      %v203 = vlog2.pop %v202
      %v204 = vmul.f32 %v203, 0.6931472
      %v205 = vadd.f32 %v201, %v204
      %v206 = vld [vmem:[#allocation4] sm:$0xff]
      %v207 = vsub.f32 %v205, %v206
      %vm208 = vcmask 7168
      %209 = vst.msk [vmem:[%s3] sm:$0xff] %vm208, %v207
    $region37: #{tpu_custom_call.1} parent=1 // pred_fallthru
      _
    // Predicated region
    $region38: #{tpu_custom_call.1} parent=1 // pred_check
      _
    $region39: #{tpu_custom_call.1} parent=1 // pred_check_branch
      %211 = sbr.rel (0) target = $region41
    $region40: #{tpu_custom_call.1} parent=1 // pred_region
      _
    $region41: #{tpu_custom_call.1} parent=1 // pred_fallthru
      _
    // Predicated region
    $region42: #{tpu_custom_call.1} parent=1 // pred_check
      _
    $region43: #{tpu_custom_call.1} parent=1 // pred_check_branch
      %213 = sbr.rel (0) target = $region45
    $region44: #{tpu_custom_call.1} parent=1 // pred_region
      _
    $region45: #{tpu_custom_call.1} parent=1 // pred_fallthru
      _
    %214 = vsyncpa [#allocation6], 1
    %215 = vsyncpa [#allocation8], 1

</llo_original>
